<compile_context>
chip_gen: v7x
topology: tpu7x:2x2x1
jax: 0.10.0
libtpu: 0.0.40
codegen_flags: <defaults>
</compile_context>

<pallas_src>
import functools

import jax
import jax.numpy as jnp
from jax import lax
from jax.experimental import pallas as pl
from jax.experimental.pallas import tpu as pltpu


# ---------------------------------------------------------------------------
# helpers
# ---------------------------------------------------------------------------
def _tile(dim, target):
    """Largest tile <= target that divides dim, else fall back to the full dim."""
    t = min(target, dim)
    return t if dim % t == 0 else dim


def _default_vmem_limit():
    """~48 MiB on v7x (64 MiB VMEM/TC), ~96 MiB on v5e/v6e (128 MiB VMEM)."""
    try:
        cap = getattr(pltpu.get_tpu_info(), "vmem_capacity_bytes", None)
        if cap:
            return int(min(100 * 2**20, cap * 3 // 4))
    except Exception:
        pass
    return 64 * 2**20


# ---------------------------------------------------------------------------
# kernel 1: tiled projection matmul  y[b] = x[b] @ W^T   (weight VMEM-resident)
# ---------------------------------------------------------------------------
def _proj_kernel(x_ref, wt_ref, o_ref):
    o_ref[...] = jnp.dot(x_ref[...], wt_ref[...],
                         preferred_element_type=jnp.float32).astype(o_ref.dtype)


def _project(x, w_t, *, s_tile, vmem_limit):
    B, S, Din = x.shape
    Dout = w_t.shape[1]
    ts = _tile(S, s_tile)
    return pl.pallas_call(
        _proj_kernel,
        out_shape=jax.ShapeDtypeStruct((B, S, Dout), x.dtype),
        grid=(B, S // ts),
        in_specs=[
            pl.BlockSpec((None, ts, Din), lambda b, si: (b, si, 0)),
            pl.BlockSpec((Din, Dout), lambda b, si: (0, 0)),     # resident weight
        ],
        out_specs=pl.BlockSpec((None, ts, Dout), lambda b, si: (b, si, 0)),
        compiler_params=pltpu.CompilerParams(
            dimension_semantics=("parallel", "parallel"),
            vmem_limit_bytes=vmem_limit),
    )(x, w_t)


# ---------------------------------------------------------------------------
# kernel 2: flash-style multi-head attention + deferred output projection
# ---------------------------------------------------------------------------
def _flash_mha_kernel(mask_ref, q_ref, k_ref, v_ref, wo_ref, o_ref,
                      m_sc, l_sc, acc_sc, *, n_heads, tq, tk, mask_future):
    qi = pl.program_id(1)
    ki = pl.program_id(2)

    @pl.when(ki == 0)
    def _init():
        m_sc[...] = jnp.full_like(m_sc, -jnp.inf)
        l_sc[...] = jnp.zeros_like(l_sc)
        acc_sc[...] = jnp.zeros_like(acc_sc)

    def _compute():
        q = q_ref[...]                                   # (H, tq, dk), pre-scaled
        k = k_ref[...]                                   # (H, tk, dk)
        v = v_ref[...]                                   # (H, tk, dk)

        # Scores for all heads at once: (H, tq, tk), f32 accumulation on MXU.
        s = lax.dot_general(q, k, (((2,), (2,)), ((0,), (0,))),
                            preferred_element_type=jnp.float32)

        # Combined padding (+ optional causal) mask: built once per step,
        # applied as an additive bias broadcast over the head axis.
        keep = mask_ref[...] != 0                        # (1, tk)
        if mask_future:
            row = qi * tq + lax.broadcasted_iota(jnp.int32, (tq, tk), 0)
            col = ki * tk + lax.broadcasted_iota(jnp.int32, (tq, tk), 1)
            keep = jnp.logical_and(keep, row >= col)     # (tq, tk)
        bias = jnp.where(keep, 0.0, -1e30).astype(jnp.float32)
        s = s + bias

        # Online softmax update (all elementwise math in f32).
        m_prev = m_sc[...]
        m_new = jnp.maximum(m_prev, jnp.max(s, axis=-1, keepdims=True))
        alpha = jnp.exp(m_prev - m_new)
        p = jnp.exp(s - m_new)                           # (H, tq, tk)
        l_sc[...] = alpha * l_sc[...] + jnp.sum(p, axis=-1, keepdims=True)
        pv = lax.dot_general(p.astype(v.dtype), v,
                             (((2,), (1,)), ((0,), (0,))),
                             preferred_element_type=jnp.float32)   # (H, tq, dk)
        acc_sc[...] = alpha * acc_sc[...] + pv
        m_sc[...] = m_new

    if mask_future:
        # Skip kv tiles entirely above the causal diagonal.
        @pl.when(ki * tk < (qi + 1) * tq)
        def _():
            _compute()
    else:
        _compute()

    @pl.when(ki == pl.num_programs(2) - 1)
    def _finalize():
        d_model = wo_ref.shape[-1]
        out = jnp.zeros((tq, d_model), jnp.float32)
        for h in range(n_heads):
            head = (acc_sc[h] / l_sc[h]).astype(wo_ref.dtype)      # (tq, dk)
            out = out + jnp.dot(head, wo_ref[h],
                                preferred_element_type=jnp.float32)
        o_ref[...] = out.astype(o_ref.dtype)


# ---------------------------------------------------------------------------
# wrapper == MultiHeadAttention.forward
# ---------------------------------------------------------------------------
def multi_head_attention(x_query, x_key, x_value, attention_mask,
                         wq, wk, wv, wo, *, n_heads, mask_future=False,
                         q_tile=256, kv_tile=512, s_tile=256,
                         compute_dtype=None):
    """x_*: (B, S, D); attention_mask: (B, S) of {0,1};
    w*: (D, D) PyTorch Linear layout (out, in), i.e. y = x @ W.T."""
    B, S, D = x_query.shape
    assert D % n_heads == 0
    dk = D // n_heads
    out_dtype = x_query.dtype            # captured BEFORE any compute_dtype cast

    # Fold 1/sqrt(dk) into the query projection weight (one-time, wrapper side).
    wq = wq * (dk ** -0.5)

    if compute_dtype is not None:
        x_query, x_key, x_value = (x.astype(compute_dtype)
                                   for x in (x_query, x_key, x_value))
        wq, wk, wv, wo = (w.astype(compute_dtype) for w in (wq, wk, wv, wo))

    vmem_limit = _default_vmem_limit()

    # Hoisted Q/K/V projections: full-D contraction, weights VMEM-resident,
    # computed exactly once per call (not per query tile / head).
    q = _project(x_query, wq.T, s_tile=s_tile, vmem_limit=vmem_limit)
    k = _project(x_key, wk.T, s_tile=s_tile, vmem_limit=vmem_limit)
    v = _project(x_value, wv.T, s_tile=s_tile, vmem_limit=vmem_limit)

    # One-time layout plumbing: (B, S, D) -> (B, H, S, dk).
    def _split_heads(t):
        return jnp.transpose(t.reshape(B, S, n_heads, dk), (0, 2, 1, 3))
    q, k, v = _split_heads(q), _split_heads(k), _split_heads(v)

    # Wo pre-split per head: row block h of Wo.T -> (H, dk, D); VMEM-resident.
    wo_h = wo.T.reshape(n_heads, dk, D)

    mask3 = attention_mask.reshape(B, 1, S).astype(jnp.float32)

    tq = _tile(S, q_tile)
    tk = _tile(S, kv_tile)
    n_q, n_kv = S // tq, S // tk

    kernel = functools.partial(_flash_mha_kernel, n_heads=n_heads,
                               tq=tq, tk=tk, mask_future=mask_future)

    return pl.pallas_call(
        kernel,
        out_shape=jax.ShapeDtypeStruct((B, S, D), out_dtype),
        grid=(B, n_q, n_kv),
        in_specs=[
            pl.BlockSpec((None, 1, tk), lambda b, qi, ki: (b, 0, ki)),          # mask
            pl.BlockSpec((None, n_heads, tq, dk), lambda b, qi, ki: (b, 0, qi, 0)),  # Q
            pl.BlockSpec((None, n_heads, tk, dk), lambda b, qi, ki: (b, 0, ki, 0)),  # K
            pl.BlockSpec((None, n_heads, tk, dk), lambda b, qi, ki: (b, 0, ki, 0)),  # V
            pl.BlockSpec((n_heads, dk, D), lambda b, qi, ki: (0, 0, 0)),         # Wo (resident)
        ],
        out_specs=pl.BlockSpec((None, tq, D), lambda b, qi, ki: (b, qi, 0)),
        scratch_shapes=[
            pltpu.VMEM((n_heads, tq, 1), jnp.float32),   # running max m
            pltpu.VMEM((n_heads, tq, 1), jnp.float32),   # running denom l
            pltpu.VMEM((n_heads, tq, dk), jnp.float32),  # running PV accumulator
        ],
        compiler_params=pltpu.CompilerParams(
            dimension_semantics=("parallel", "parallel", "arbitrary"),
            vmem_limit_bytes=vmem_limit),
    )(mask3, q, k, v, wo_h)


# ---------------------------------------------------------------------------
# pure-JAX reference mirroring the PyTorch module exactly
# ---------------------------------------------------------------------------
def _reference(x_query, x_key, x_value, attention_mask, wq, wk, wv, wo,
               *, n_heads, mask_future=False):
    B, S, D = x_query.shape
    dk = D // n_heads
    Q = x_query @ wq.T
    K = x_key @ wk.T
    V = x_value @ wv.T
    outs = []
    for h in range(n_heads):
        q = Q[..., h * dk:(h + 1) * dk]
        k = K[..., h * dk:(h + 1) * dk]
        v = V[..., h * dk:(h + 1) * dk]
        attn = (q @ jnp.swapaxes(k, -1, -2)) / (dk ** 0.5)
        if mask_future:
            tri = jnp.tril(jnp.ones((S, S)))
            attn = jnp.where(tri == 0, -jnp.inf, attn)
        attn = jnp.where(attention_mask[:, None, :] == 0, -jnp.inf, attn)
        attn = jax.nn.softmax(attn, axis=-1)
        outs.append(attn @ v)
    return jnp.concatenate(outs, axis=-1) @ wo.T


if __name__ == "__main__":
    B, S, D, H = 2, 8, 32, 4   # batch, seq, d_model, n_heads

    key = jax.random.PRNGKey(0)
    kxq, kxk, kxv, kwq, kwk, kwv, kwo = jax.random.split(key, 7)

    x_q = jax.random.normal(kxq, (B, S, D), dtype=jnp.float32)
    x_k = jax.random.normal(kxk, (B, S, D), dtype=jnp.float32)
    x_v = jax.random.normal(kxv, (B, S, D), dtype=jnp.float32)

    # Deterministic "Linear(d_model, d_model, bias=False)" weights, (out, in).
    bound = 1.0 / (D ** 0.5)
    wq = jax.random.uniform(kwq, (D, D), jnp.float32, -bound, bound)
    wk = jax.random.uniform(kwk, (D, D), jnp.float32, -bound, bound)
    wv = jax.random.uniform(kwv, (D, D), jnp.float32, -bound, bound)
    wo = jax.random.uniform(kwo, (D, D), jnp.float32, -bound, bound)

    # Padding mask: second batch element has last 2 keys masked out.
    attention_mask = jnp.array(
        [[1] * S,
         [1] * (S - 2) + [0, 0]], dtype=jnp.float32)

    # ---- f32 path (MultiHeadAttention default: mask_future=False) ----------
    out = multi_head_attention(x_q, x_k, x_v, attention_mask,
                               wq, wk, wv, wo, n_heads=H, mask_future=False)
    out = jax.block_until_ready(out)
    ref = _reference(x_q, x_k, x_v, attention_mask, wq, wk, wv, wo,
                     n_heads=H, mask_future=False)
    assert out.shape == (B, S, D)
    assert jnp.allclose(out, ref, rtol=1e-3, atol=1e-3), \
        f"max abs err {jnp.max(jnp.abs(out - ref))}"

    # ---- f32 path with causal masking --------------------------------------
    out_c = multi_head_attention(x_q, x_k, x_v, attention_mask,
                                 wq, wk, wv, wo, n_heads=H, mask_future=True)
    out_c = jax.block_until_ready(out_c)
    ref_c = _reference(x_q, x_k, x_v, attention_mask, wq, wk, wv, wo,
                       n_heads=H, mask_future=True)
    assert jnp.allclose(out_c, ref_c, rtol=1e-3, atol=1e-3), \
        f"max abs err (causal) {jnp.max(jnp.abs(out_c - ref_c))}"

    # ---- bf16 MXU path (opt-in); output stays in the caller's f32 dtype ----
    out_bf16 = multi_head_attention(x_q, x_k, x_v, attention_mask,
                                    wq, wk, wv, wo, n_heads=H,
                                    mask_future=True,
                                    compute_dtype=jnp.bfloat16)
    out_bf16 = jax.block_until_ready(out_bf16)
    assert out_bf16.dtype == jnp.float32
    assert jnp.allclose(out_bf16, ref_c, rtol=1e-1, atol=1e-1), \
        f"max abs err (bf16) {jnp.max(jnp.abs(out_bf16 - ref_c))}"

    print("KERNEL_OK")
</pallas_src>

<mosaic_0001>
module attributes {stable_mosaic.version = 11 : i64} {
  func.func @_proj_kernel(%arg0: i32, %arg1: i32, %arg2: memref<1x8x32xf32, #tpu.memory_space<vmem>>, %arg3: memref<32x32xf32, #tpu.memory_space<vmem>>, %arg4: memref<1x8x32xf32, #tpu.memory_space<vmem>>) attributes {dimension_semantics = [#tpu.dimension_semantics<parallel>, #tpu.dimension_semantics<parallel>], iteration_bounds = array<i64: 2, 1>, scalar_prefetch = 0 : i64, scratch_operands = 0 : i64, tpu.core_type = #tpu.core_type<tc>, window_params = [{transform_indices = @transform_0, window_bounds = array<i64: 1, 8, 32>}, {pipeline_mode = #tpu.pipeline_mode<synchronous>, transform_indices = @transform_1, window_bounds = array<i64: 32, 32>}, {transform_indices = @transform_2, window_bounds = array<i64: 1, 8, 32>}]} {
    %c0 = arith.constant 0 : index
    %c0_0 = arith.constant 0 : index
    %c0_1 = arith.constant 0 : index
    %0 = vector.load %arg2[%c0, %c0_0, %c0_1] : memref<1x8x32xf32, #tpu.memory_space<vmem>>, vector<1x8x32xf32>
    %1 = vector.shape_cast %0 : vector<1x8x32xf32> to vector<8x32xf32>
    %c0_2 = arith.constant 0 : index
    %c0_3 = arith.constant 0 : index
    %2 = vector.load %arg3[%c0_2, %c0_3] : memref<32x32xf32, #tpu.memory_space<vmem>>, vector<32x32xf32>
    %cst = arith.constant dense<0.000000e+00> : vector<8x32xf32>
    %3 = tpu.matmul %1, %2, %cst {dimension_numbers = #tpu.dot_dimension_numbers<[1], [0], [0], [1], [0, 0, 1, 1], [], []>} : vector<8x32xf32>, vector<32x32xf32>, vector<8x32xf32> -> vector<8x32xf32>
    %c0_4 = arith.constant 0 : index
    %c0_5 = arith.constant 0 : index
    %c0_6 = arith.constant 0 : index
    %4 = vector.load %arg4[%c0_4, %c0_5, %c0_6] : memref<1x8x32xf32, #tpu.memory_space<vmem>>, vector<1x8x32xf32>
    %5 = vector.shape_cast %4 : vector<1x8x32xf32> to vector<8x32xf32>
    %6 = vector.shape_cast %3 : vector<8x32xf32> to vector<1x8x32xf32>
    tpu.vector_store %arg4[%c0_4, %c0_5, %c0_6], %6 {strides = array<i32>} : memref<1x8x32xf32, #tpu.memory_space<vmem>>, vector<1x8x32xf32>,
    return
  }
  func.func @transform_0(%arg0: i32, %arg1: i32) -> (i32, i32, i32) {
    %c0_i32 = arith.constant 0 : i32
    %c0_i32_0 = arith.constant 0 : i32
    return %arg0, %arg1, %c0_i32 : i32, i32, i32
  }
  func.func @transform_1(%arg0: i32, %arg1: i32) -> (i32, i32) {
    %c0_i32 = arith.constant 0 : i32
    %c0_i32_0 = arith.constant 0 : i32
    %c0_i32_1 = arith.constant 0 : i32
    return %c0_i32, %c0_i32_0 : i32, i32
  }
  func.func @transform_2(%arg0: i32, %arg1: i32) -> (i32, i32, i32) {
    %c0_i32 = arith.constant 0 : i32
    %c0_i32_0 = arith.constant 0 : i32
    return %arg0, %arg1, %c0_i32 : i32, i32, i32
  }
}

</mosaic_0001>

<llo_original>
// kernel: tpu_custom_call.1
$region0: #{tpu_custom_call.1}
  #allocation0 [shape = 'u32[]', space=smem, size = 0x4, offset = 0x4, fixed_abs, tag = 'smem constant byte address 0x4 - core index']
  #allocation1 [shape = 'u32[144,128]{1,0:T(1,128)}', space=vmem, size = 0x12000, scoped, tag = 'internal scratch']
  %s0 = inlined_call_operand.hbm [shape: f32[2,8,32], index: 0, kind: input, shape index: {}]
  %s1 = inlined_call_operand.hbm [shape: f32[32,32], index: 1, kind: input, shape index: {}]
  %s2 = inlined_call_operand.hbm [shape: f32[2,8,32], index: 2, kind: output, shape index: {}]
  %s3 = sld [smem:[#allocation0]]
  $region49: #{tpu_custom_call.1} parent=0
    _
  %s5 = ssub.s32 1, %s3
  %s6 = scalar_select 0, %s5, %s3
  $region1: #{tpu_custom_call.1} parent=0
    #allocation2 [shape = 'u8[8192]{0}', space=vmem, size = 0x2000, scoped, tag = 'input window, operand 0']
    #allocation3 [shape = 's32[2]{0}', space=sflag, size = 0x8, scoped, tag = 'scoped memory for tpu_custom_call.1']
    #allocation4 [shape = 's32[2]{0}', space=sflag, size = 0x8, scoped, tag = 'scoped memory for tpu_custom_call.1']
    #allocation5 [shape = 'u8[16384]{0}', space=vmem, size = 0x4000, scoped, tag = 'input window, operand 1, single buffered']
    #allocation6 [shape = 's32[1]{0}', space=sflag, size = 0x4, scoped, tag = 'scoped memory for tpu_custom_call.1']
    #allocation7 [shape = 'u8[8192]{0}', space=vmem, size = 0x2000, scoped, tag = 'output window, operand 0']
    %7 = vsyncpa [#allocation3], 0
    %s8 = scalar_lea.sflag [#allocation3], 1
    %9 = vsyncpa %s8, 0
    %10 = vsyncpa [#allocation6], 0
    %11 = vsyncpa [#allocation4], 0
    %s12 = scalar_lea.sflag [#allocation4], 1
    %13 = vsyncpa %s12, 0
    loop: start=0, step=1, limit=4
    $region2: #{tpu_custom_call.1} parent=1 // loop_pre_header
      _
    $region3: #{tpu_custom_call.1} parent=1 // loop_header
      %s15 = sphi 0, %s19
      %p16 = scmp.ge.s32.totalorder %s15, 4
      %s22 = sphi 0, %s34
      %s23 = sphi 0, %s30
      %s24 = sphi 0, %s22
      %s25 = sphi 0, %s23
      %s26 = sphi 0, %s24
      %s27 = sphi 0, %s25
      %s39 = sphi 0, %s41
      %s42 = sphi 0, %s39
      %s43 = sphi 0, %s42
      %s59 = sphi 0, %s43
      %s63 = sphi 0, %s63
      %s65 = sphi 0, %s63
      %s66 = sphi 0, %s65
      %s80 = sphi 0, %s66
      %s88 = sphi 0, %s90
      %s91 = sphi 0, %s88
      %s92 = sphi 0, %s91
      %s108 = sphi 0, %s92
    $region4: #{tpu_custom_call.1} parent=1 // loop_header_branch
      %18 = sbr.rel (%p16) target = $region8
    $region5: #{tpu_custom_call.1} parent=1 // loop_body
      %s20 = ssub.s32 %s15, 1
      %s21 = ssub.s32 %s15, 2
      %s28 = sadd.s32 1, %s23
      %p29 = scmp.ge.s32.totalorder %s28, 1
      %s30 = scalar_select %p29, 0, %s28
      %s31 = sadd.s32 1, %s22
      %s32 = scalar_select %p29, %s31, %s22
      %p33 = scmp.ge.s32.totalorder %s32, 2
      %s34 = scalar_select %p33, 0, %s32
      %s35 = ssub.s32 %s22, %s34
      %s36 = ssub.s32 %s23, %s30
      %s37 = sor.u32 %s35, %s36
      %p38 = scmp.eq.s32.totalorder %s37, 0
      %s40 = sadd.s32 %s39, 1
      %s41 = scalar_select %p38, %s39, %s40
      %p44 = pneg %p38
      %p45 = scmp.eq.s32.totalorder %s15, 1
      %p46 = por %p44, %p45
      %p47 = scmp.ne.s32.totalorder %s39, %s42
      %p48 = scmp.eq.s32.totalorder %s15, 0
      %p49 = por %p47, %p48
      %p50 = scmp.ne.s32.totalorder %s39, %s42
      %p51 = scmp.eq.s32.totalorder %s20, 1
      %p52 = por %p50, %p51
      %p53 = scmp.ne.s32.totalorder %s42, %s43
      %p54 = scmp.eq.s32.totalorder %s20, 0
      %p55 = por %p53, %p54
      %p56 = scmp.ne.s32.totalorder %s42, %s43
      %p57 = scmp.eq.s32.totalorder %s21, 1
      %p58 = por %p56, %p57
      %p60 = scmp.ne.s32.totalorder %s43, %s59
      %p61 = scmp.eq.s32.totalorder %s21, 0
      %p62 = por %p60, %p61
      %s64 = sadd.s32 %s63, 1
      %p67 = scmp.eq.s32.totalorder %s15, 1
      %p68 = scmp.ne.s32.totalorder %s63, %s65
      %p69 = scmp.eq.s32.totalorder %s15, 0
      %p70 = por %p68, %p69
      %p71 = scmp.ne.s32.totalorder %s63, %s65
      %p72 = scmp.eq.s32.totalorder %s20, 1
      %p73 = por %p71, %p72
      %p74 = scmp.ne.s32.totalorder %s65, %s66
      %p75 = scmp.eq.s32.totalorder %s20, 0
      %p76 = por %p74, %p75
      %p77 = scmp.ne.s32.totalorder %s65, %s66
      %p78 = scmp.eq.s32.totalorder %s21, 1
      %p79 = por %p77, %p78
      %p81 = scmp.ne.s32.totalorder %s66, %s80
      %p82 = scmp.eq.s32.totalorder %s21, 0
      %p83 = por %p81, %p82
      %s84 = ssub.s32 %s22, %s34
      %s85 = ssub.s32 %s23, %s30
      %s86 = sor.u32 %s84, %s85
      %p87 = scmp.eq.s32.totalorder %s86, 0
      %s89 = sadd.s32 %s88, 1
      %s90 = scalar_select %p87, %s88, %s89
      %p93 = pneg %p87
      %p94 = scmp.eq.s32.totalorder %s15, 1
      %p95 = por %p93, %p94
      %p96 = scmp.ne.s32.totalorder %s88, %s91
      %p97 = scmp.eq.s32.totalorder %s15, 0
      %p98 = por %p96, %p97
      %p99 = scmp.ne.s32.totalorder %s88, %s91
      %p100 = scmp.eq.s32.totalorder %s20, 1
      %p101 = por %p99, %p100
      %p102 = scmp.ne.s32.totalorder %s91, %s92
      %p103 = scmp.eq.s32.totalorder %s20, 0
      %p104 = por %p102, %p103
      %p105 = scmp.ne.s32.totalorder %s91, %s92
      %p106 = scmp.eq.s32.totalorder %s21, 1
      %p107 = por %p105, %p106
      %p109 = scmp.ne.s32.totalorder %s92, %s108
      %p110 = scmp.eq.s32.totalorder %s21, 0
      %p111 = por %p109, %p110
      %p112 = scmp.le.s32.totalorder 1, %s15
      %p113 = scmp.lt.s32.totalorder %s15, 3
      %p114 = pnand %p112, %p113
      %p115 = pneg %p114
      // Predicated region
      $region9: #{tpu_custom_call.1} parent=5 // pred_check
        _
      $region10: #{tpu_custom_call.1} parent=5 // pred_check_branch
        %117 = sbr.rel (%p114) target = $region12
      $region11: #{tpu_custom_call.1} parent=5 // pred_region
        %s118 = ssub.s32 %s15, 1
        // Predicated region
        $region13: #{tpu_custom_call.1} parent=11 // pred_check
          %p119 = pneg %p76
        $region14: #{tpu_custom_call.1} parent=11 // pred_check_branch
          %121 = sbr.rel (%p119) target = $region16
        $region15: #{tpu_custom_call.1} parent=11 // pred_region
          %s123 = ssub.s32 512, 512
          %124 = vsyncadd [#allocation6], %s123
          %s125 = sshll.u32 [#allocation5], 4
          %s126 = int_to_ptr.vmem [resolvable:$true] %s125
          %131 = dma.hbm_to_vmem [thread:$0]  %s1, 512, %s126, [#allocation6], 128, 128, 8
        $region16: #{tpu_custom_call.1} parent=11 // pred_fallthru
          _
      $region12: #{tpu_custom_call.1} parent=5 // pred_fallthru
        _
      %p132 = scmp.lt.s32.totalorder %s15, 2
      // Predicated region
      $region17: #{tpu_custom_call.1} parent=5 // pred_check
        %p133 = pneg %p132
      $region18: #{tpu_custom_call.1} parent=5 // pred_check_branch
        %135 = sbr.rel (%p133) target = $region20
      $region19: #{tpu_custom_call.1} parent=5 // pred_region
        // Predicated region
        $region21: #{tpu_custom_call.1} parent=19 // pred_check
          %p136 = pneg %p49
        $region22: #{tpu_custom_call.1} parent=19 // pred_check_branch
          %138 = sbr.rel (%p136) target = $region24
        $region23: #{tpu_custom_call.1} parent=19 // pred_region
          %s139 = sand.u32 %s39, 1
          %s140 = scalar_lea.sflag [#allocation3], %s139
          %s141 = sand.u32 %s39, 1
          %s142 = smul.addr %s141, 8
          %s143 = scalar_lea.vmem [#allocation2], %s142
          %s145 = ssub.s32 128, 128
          %146 = vsyncadd %s140, %s145
          %s147 = sadd.s32 %s23, %s22
          %s148 = smul.addr %s147, 128
          %s149 = scalar_lea.hbm %s0, %s148
          %s151 = sshll.u32 %s143, 4
          %s152 = int_to_ptr.vmem [resolvable:$true] %s151
          %154 = dma.hbm_to_vmem [thread:$0]  %s149, 128, %s152, %s140
        $region24: #{tpu_custom_call.1} parent=19 // pred_fallthru
          _
      $region20: #{tpu_custom_call.1} parent=5 // pred_fallthru
        _
      %p155 = scmp.le.s32.totalorder 1, %s15
      %p156 = scmp.lt.s32.totalorder %s15, 3
      %p157 = pnand %p155, %p156
      %p158 = pneg %p157
      // Predicated region
      $region25: #{tpu_custom_call.1} parent=5 // pred_check
        _
      $region26: #{tpu_custom_call.1} parent=5 // pred_check_branch
        %160 = sbr.rel (%p157) target = $region28
      $region27: #{tpu_custom_call.1} parent=5 // pred_region
        %s161 = ssub.s32 %s15, 1
        %s162 = sand.u32 %s42, 1
        %s163 = scalar_lea.sflag [#allocation3], %s162
        %s164 = sand.u32 %s42, 1
        %s165 = smul.addr %s164, 8
        %s166 = scalar_lea.vmem [#allocation2], %s165
        // Predicated region
        $region29: #{tpu_custom_call.1} parent=27 // pred_check
          %p167 = pneg %p55
        $region30: #{tpu_custom_call.1} parent=27 // pred_check_branch
          %169 = sbr.rel (%p167) target = $region32
        $region31: #{tpu_custom_call.1} parent=27 // pred_region
          %170 = dma.done %s163, 128
        $region32: #{tpu_custom_call.1} parent=27 // pred_fallthru
          _
        // Predicated region
        $region33: #{tpu_custom_call.1} parent=27 // pred_check
          %p171 = pneg %p76
        $region34: #{tpu_custom_call.1} parent=27 // pred_check_branch
          %173 = sbr.rel (%p171) target = $region36
        $region35: #{tpu_custom_call.1} parent=27 // pred_region
          %174 = dma.done [#allocation6], 512
        $region36: #{tpu_custom_call.1} parent=27 // pred_fallthru
          _
        %s175 = sand.u32 %s42, 1
        %s176 = scalar_lea.sflag [#allocation3], %s175
        %s177 = sand.u32 %s42, 1
        %s178 = smul.addr %s177, 8
        %s179 = scalar_lea.vmem [#allocation2], %s178
        %p180 = pneg %p55
        %p181 = pneg %p52
        %p182 = pneg %p76
        %p183 = pneg %p73
        %p184 = pneg %p104
        %p185 = pneg %p101
        %s186 = sand.u32 %s91, 1
        %s187 = scalar_lea.sflag [#allocation4], %s186
        %s188 = sand.u32 %s91, 1
        %s189 = smul.addr %s188, 8
        %s190 = scalar_lea.vmem [#allocation7], %s189
        %v191 = vld [vmem:[%s166] sm:$0xff]
        %v192 = vld [vmem:[#allocation5] sm:$0xff]
        %v193 = vld [vmem:[#allocation5 + $0x8] sm:$0xff]
        %v194 = vld [vmem:[#allocation5 + $0x10] sm:$0xff]
        %v195 = vld [vmem:[#allocation5 + $0x18] sm:$0xff]
        %vm196 = vcmask 261120
        %v198 = vsel %vm196, %v191, 0
        %200 = vmatprep.subr.mxu0 0.0
        %201 = vmatpush1.msra.mxu0 %v192
        %202 = vmatprep.subr.mxu0 0.0
        %203 = vmatpush1.msra.mxu0 %v193
        %204 = vmatprep.subr.mxu0 0.0
        %205 = vmatpush1.msra.mxu0 %v194
        %206 = vmatprep.subr.mxu0 0.0
        %207 = vmatpush1.msra.mxu0 %v195
        %208 = vmatprep.subr.mxu0 0.0
        %209 = vmatpush1.msra.mxu0 0.0
        %210 = vmatprep.subr.mxu0 0.0
        %211 = vmatpush1.msra.mxu0 0.0
        %212 = vmatprep.subr.mxu0 0.0
        %213 = vmatpush1.msra.mxu0 0.0
        %214 = vmatprep.subr.mxu0 0.0
        %215 = vmatpush1.msra.mxu0 0.0
        %216 = vmatprep.subr.mxu0 0.0
        %217 = vmatpush1.msra.mxu0 0.0
        %218 = vmatprep.subr.mxu0 0.0
        %219 = vmatpush1.msra.mxu0 0.0
        %220 = vmatprep.subr.mxu0 0.0
        %221 = vmatpush1.msra.mxu0 0.0
        %222 = vmatprep.subr.mxu0 0.0
        %223 = vmatpush1.msra.mxu0 0.0
        %224 = vmatprep.subr.mxu0 0.0
        %225 = vmatpush1.msra.mxu0 0.0
        %226 = vmatprep.subr.mxu0 0.0
        %227 = vmatpush1.msra.mxu0 0.0
        %228 = vmatprep.subr.mxu0 0.0
        %229 = vmatpush1.msra.mxu0 0.0
        %230 = vmatprep.subr.mxu0 0.0
        %231 = vmatpush1.msra.mxu0 0.0
        %232 = vmatprep.subr.mxu0 0.0
        %233 = vmatpush1.msra.mxu0 0.0
        %234 = vmatprep.subr.mxu0 0.0
        %235 = vmatpush1.msra.mxu0 0.0
        %236 = vmatprep.subr.mxu0 0.0
        %237 = vmatpush1.msra.mxu0 0.0
        %238 = vmatprep.subr.mxu0 0.0
        %239 = vmatpush1.msra.mxu0 0.0
        %240 = vmatprep.subr.mxu0 0.0
        %241 = vmatpush1.msra.mxu0 0.0
        %242 = vmatprep.subr.mxu0 0.0
        %243 = vmatpush1.msra.mxu0 0.0
        %244 = vmatprep.subr.mxu0 0.0
        %245 = vmatpush1.msra.mxu0 0.0
        %246 = vmatprep.subr.mxu0 0.0
        %247 = vmatpush1.msra.mxu0 0.0
        %248 = vmatprep.subr.mxu0 0.0
        %249 = vmatpush1.msra.mxu0 0.0
        %250 = vmatprep.subr.mxu0 0.0
        %251 = vmatpush1.msra.mxu0 0.0
        %252 = vmatprep.subr.mxu0 0.0
        %253 = vmatpush1.msra.mxu0 0.0
        %254 = vmatprep.subr.mxu0 0.0
        %255 = vmatpush1.msra.mxu0 0.0
        %256 = vmatprep.subr.mxu0 0.0
        %257 = vmatpush1.msra.mxu0 0.0
        %258 = vmatprep.subr.mxu0 0.0
        %259 = vmatpush1.msra.mxu0 0.0
        %260 = vmatprep.subr.mxu0 0.0
        %261 = vmatpush1.msra.mxu0 0.0
        %262 = vmatprep.subr.mxu0 0.0
        %263 = vmatpush1.msra.mxu0 0.0
        %264 = vmatprep.mubr.f32.mxu0 0.0
        %265 = vmatmul.mubr.f32.gmra.mrb[0].mxu0 %v198
        %v266 = vpop.f32.mrb[0].mxu0
        %v267 = vadd.f32 0.0, %v266
        %v268 = vpop.f32.mrb[0].mxu0
        %269 = vdwg.mxu0
        %270 = vst.msk [vmem:[%s190] sm:$0xff] %vm196, %v267
        %s271 = sand.u32 %s91, 1
        %s272 = scalar_lea.sflag [#allocation4], %s271
        %s273 = sand.u32 %s91, 1
        %s274 = smul.addr %s273, 8
        %s275 = scalar_lea.vmem [#allocation7], %s274
        // Predicated region
        $region37: #{tpu_custom_call.1} parent=27 // pred_check
          %p276 = pneg %p101
        $region38: #{tpu_custom_call.1} parent=27 // pred_check_branch
          %278 = sbr.rel (%p276) target = $region40
        $region39: #{tpu_custom_call.1} parent=27 // pred_region
          %s280 = ssub.s32 128, 128
          %281 = vsyncadd %s272, %s280
          %s282 = sadd.s32 %s25, %s24
          %s283 = smul.addr %s282, 128
          %s284 = scalar_lea.hbm %s2, %s283
          %s286 = sshll.u32 %s275, 4
          %s287 = int_to_ptr.vmem [resolvable:$true] %s286
          %289 = dma.vmem_to_hbm [thread:$0]  %s287, 128, %s284, %s272
        $region40: #{tpu_custom_call.1} parent=27 // pred_fallthru
          _
      $region28: #{tpu_custom_call.1} parent=5 // pred_fallthru
        _
      %p290 = scmp.le.s32.totalorder 2, %s15
      // Predicated region
      $region41: #{tpu_custom_call.1} parent=5 // pred_check
        %p291 = pneg %p290
      $region42: #{tpu_custom_call.1} parent=5 // pred_check_branch
        %293 = sbr.rel (%p291) target = $region44
      $region43: #{tpu_custom_call.1} parent=5 // pred_region
        %s294 = ssub.s32 %s15, 2
        // Predicated region
        $region45: #{tpu_custom_call.1} parent=43 // pred_check
          %p295 = pneg %p107
        $region46: #{tpu_custom_call.1} parent=43 // pred_check_branch
          %297 = sbr.rel (%p295) target = $region48
        $region47: #{tpu_custom_call.1} parent=43 // pred_region
          %s298 = sand.u32 %s92, 1
          %s299 = scalar_lea.sflag [#allocation4], %s298
          %s300 = sand.u32 %s92, 1
          %s301 = smul.addr %s300, 8
          %s302 = scalar_lea.vmem [#allocation7], %s301
          %303 = dma.done %s299, 128
        $region48: #{tpu_custom_call.1} parent=43 // pred_fallthru
          _
      $region44: #{tpu_custom_call.1} parent=5 // pred_fallthru
        _
    $region6: #{tpu_custom_call.1} parent=1 // loop_footer
      %s19 = sadd.s32 1, %s15
    $region7: #{tpu_custom_call.1} parent=1 // loop_footer_branch
      %14 = sbr.rel target = $region3
    $region8: #{tpu_custom_call.1} parent=1 // loop_exit
      _
    %304 = vsyncpa [#allocation3], 1
    %s305 = scalar_lea.sflag [#allocation3], 1
    %306 = vsyncpa %s305, 1
    %307 = vsyncpa [#allocation6], 1
    %308 = vsyncpa [#allocation4], 1
    %s309 = scalar_lea.sflag [#allocation4], 1
    %310 = vsyncpa %s309, 1

</llo_original>
